<compile_context>
chip_gen: v5e
topology: v5e:2x2
jax: 0.10.0
libtpu: 0.0.40
codegen_flags: <defaults>
</compile_context>

<pallas_src>
import functools

import jax
import jax.numpy as jnp
from jax import lax
from jax.experimental import pallas as pl
from jax.experimental.pallas import tpu as pltpu

OUT_H, OUT_W = 256, 256
_VMEM_LIMIT = 32 * 1024 * 1024   # safe across v5e/v6e (128 MiB) and v7x (64 MiB)

# TODO(synk): mean/std come from .npy feature stats and weights from an
# fc_model checkpoint in the original module; here they are passed in as
# plain arrays (no file I/O).


# ---------------------------------------------------------------------------
# Kernel 1: fused (norm-folded) 3-layer per-pixel MLP, transposed layout.
#   x block   : (1, C,  TP)   pixels in the lane dimension
#   out block : (1, K,  TP)   K = n_classes, lane-dense stores
# The TP-lane DMA tile is processed in `chunk`-lane sub-chunks so the
# (nh, chunk) intermediates stay in vregs.
# ---------------------------------------------------------------------------
def _mlp_kernel(x_ref, w1_ref, b1_ref, w2_ref, b2_ref, w3_ref, b3_ref, o_ref,
                *, chunk):
    tp = x_ref.shape[2]
    n_chunks = tp // chunk
    nh = w1_ref.shape[0]
    ncls = w3_ref.shape[0]

    # Hoist the lane-broadcast of the biases out of the chunk loop
    # (JAX does not CSE broadcast_in_dim).
    b1 = jnp.broadcast_to(b1_ref[...], (nh, chunk))
    b2 = jnp.broadcast_to(b2_ref[...], (nh, chunk))
    b3 = jnp.broadcast_to(b3_ref[...], (ncls, chunk))

    def _do_chunk(off):
        x = x_ref[0, :, pl.ds(off, chunk)]                            # (C, chunk)
        h1 = jnp.maximum(
            jnp.dot(w1_ref[...], x, preferred_element_type=jnp.float32) + b1,
            0.0)                                                      # (nh, chunk)
        h2 = jnp.maximum(
            jnp.dot(w2_ref[...], h1, preferred_element_type=jnp.float32) + b2,
            0.0)                                                      # (nh, chunk)
        o_ref[0, :, pl.ds(off, chunk)] = (
            jnp.dot(w3_ref[...], h2, preferred_element_type=jnp.float32) + b3)

    if n_chunks == 1:
        _do_chunk(0)
    else:
        def body(c, carry):
            _do_chunk(pl.multiple_of(c * chunk, chunk))
            return carry
        lax.fori_loop(0, n_chunks, body, 0, unroll=True)


def _choose_mlp_tiling(N, C, ncls, P):
    """Pick (pixel DMA tile, in-kernel chunk) for the MLP kernel."""
    if P <= 4096:
        tp = P
        # v7x has 2 TensorCores: with a tiny grid make its total length even.
        if N % 2 == 1 and P >= 256:
            tp = ((-(-P // 2)) + 127) // 128 * 128       # two lane-aligned tiles
    else:
        # Double-buffered in+out blocks use ~8*(C+ncls)*tp bytes; keep the DMA
        # tile large (amortize ~0.35us/step overhead) but well inside VMEM.
        cap = (12 * 1024 * 1024) // (8 * (C + ncls))
        tp = max(1024, min(8192, (cap // 512) * 512))
        # Prefer an even total grid (v7x 2 TCs); halving tp at most doubles an
        # already amortized step count.
        if (N * pl.cdiv(P, tp)) % 2 == 1 and tp >= 2048:
            half = tp // 2
            if (N * pl.cdiv(P, half)) % 2 == 0:
                tp = half
    for c in (512, 256, 128):
        if tp % c == 0:
            return tp, c
    return tp, tp


def _run_mlp(xp, w1t, b1c, w2t, b2c, w3t, b3c):
    N, C, P = xp.shape
    nh = w1t.shape[0]
    ncls = w3t.shape[0]
    tp, chunk = _choose_mlp_tiling(N, C, ncls, P)
    grid = (N, pl.cdiv(P, tp))

    inv = lambda n, t: (0, 0)   # grid-invariant (weights / biases)

    return pl.pallas_call(
        functools.partial(_mlp_kernel, chunk=chunk),
        out_shape=jax.ShapeDtypeStruct((N, ncls, P), jnp.float32),
        grid=grid,
        in_specs=[
            pl.BlockSpec((1, C, tp), lambda n, t: (n, 0, t)),
            pl.BlockSpec((nh, C), inv),
            pl.BlockSpec((nh, 1), inv),
            pl.BlockSpec((nh, nh), inv),
            pl.BlockSpec((nh, 1), inv),
            pl.BlockSpec((ncls, nh), inv),
            pl.BlockSpec((ncls, 1), inv),
        ],
        out_specs=pl.BlockSpec((1, ncls, tp), lambda n, t: (n, 0, t)),
        compiler_params=pltpu.CompilerParams(
            dimension_semantics=("parallel", "parallel"),
            vmem_limit_bytes=_VMEM_LIMIT),
    )(xp, w1t, b1c, w2t, b2c, w3t, b3c)


# ---------------------------------------------------------------------------
# Kernel 2: bilinear upsample (align_corners=True) as two matmuls per plane,
# with `bp` planes per grid step, streamed one plane at a time (tight
# fori_loop keeps the per-plane working set small).
#   small : (Pplanes, Hs, Ws)     Pplanes = N * n_classes
#   A_h   : (OUT_H, Hs), A_wT : (Ws, OUT_W)
#   out[p] = A_h @ (small[p] @ A_wT)
# ---------------------------------------------------------------------------
def _upsample_kernel(small_ref, ah_ref, awt_ref, o_ref):
    bp = small_ref.shape[0]
    compute_dtype = awt_ref.dtype

    def body(p, carry):
        s = small_ref[p]                                              # (Hs, Ws)
        tmp = jnp.dot(s, awt_ref[...],
                      preferred_element_type=jnp.float32)             # (Hs, 256) lane-dense
        tmp = tmp.astype(compute_dtype)
        o_ref[p] = jnp.dot(ah_ref[...], tmp,
                           preferred_element_type=jnp.float32)        # (256, 256)
        return carry

    lax.fori_loop(0, bp, body, 0)


def _run_upsample(small, a_h, a_wt):
    Pp, Hs, Ws = small.shape

    # Plane batch per step: amortize per-step overhead, stay inside the VMEM
    # budget, and prefer an even grid length >= 2 (v7x has 2 TensorCores).
    plane_bytes = 2 * 4 * (OUT_H * OUT_W + Hs * Ws)   # double-buffered in+out
    bp_cap = int(max(1, min(16, Pp, (20 * 1024 * 1024) // plane_bytes)))
    divisors = [d for d in range(1, bp_cap + 1) if Pp % d == 0]
    even = [d for d in divisors if (Pp // d) >= 2 and (Pp // d) % 2 == 0]
    bp = max(even) if even else max(divisors)

    return pl.pallas_call(
        _upsample_kernel,
        out_shape=jax.ShapeDtypeStruct((Pp, OUT_H, OUT_W), jnp.float32),
        grid=(Pp // bp,),
        in_specs=[
            pl.BlockSpec((bp, Hs, Ws), lambda i: (i, 0, 0)),
            pl.BlockSpec((OUT_H, Hs), lambda i: (0, 0)),
            pl.BlockSpec((Ws, OUT_W), lambda i: (0, 0)),
        ],
        out_specs=pl.BlockSpec((bp, OUT_H, OUT_W), lambda i: (i, 0, 0)),
        compiler_params=pltpu.CompilerParams(
            dimension_semantics=("parallel",),
            vmem_limit_bytes=_VMEM_LIMIT),
    )(small, a_h, a_wt)


def _interp_matrix(in_size, out_size):
    """Bilinear interpolation matrix, align_corners=True semantics."""
    if in_size == 1:
        return jnp.ones((out_size, 1), dtype=jnp.float32)
    idx = jnp.arange(out_size, dtype=jnp.float32)
    src = idx * (in_size - 1) / (out_size - 1)
    i0 = jnp.clip(jnp.floor(src).astype(jnp.int32), 0, in_size - 2)
    frac = src - i0.astype(jnp.float32)
    i1 = i0 + 1
    rows = jnp.arange(out_size)
    A = jnp.zeros((out_size, in_size), dtype=jnp.float32)
    A = A.at[rows, i0].add(1.0 - frac)
    A = A.at[rows, i1].add(frac)
    return A


# ---------------------------------------------------------------------------
# Full forward pass (== DenseClassifier.forward).
#   x_nchw : [N, C, H, W]   mean/std : [1, C]
#   w1:[C,nh] b1:[1,nh] w2:[nh,nh] b2:[1,nh] w3:[nh,K] b3:[1,K]
# ---------------------------------------------------------------------------
@functools.partial(jax.jit, static_argnames=("upsample_bf16",))
def dense_classifier_forward(x_nchw, mean, std, w1, b1, w2, b2, w3, b3,
                             upsample_bf16=False):
    N, C, H, W = x_nchw.shape
    n_classes = w3.shape[1]

    # Fold normalization into the first layer (one-time rework, outside kernel):
    #   relu(W1t @ ((x - mean)/std) + b1) == relu((W1t*inv_std) @ x + b1')
    # std clamped at 1e-6 (deviates from reference only for degenerate std).
    inv_std = 1.0 / jnp.maximum(std, 1e-6)                 # (1, C)
    w1t = w1.T * inv_std                                   # (nh, C)
    b1c = b1.reshape(-1, 1) - (w1.T @ (mean * inv_std).reshape(-1, 1))
    w2t, b2c = w2.T, b2.reshape(-1, 1)
    w3t, b3c = w3.T, b3.reshape(-1, 1)

    # Two stride-2 1x1 convs == stride-4 subsample + per-pixel dense layers.
    # (Fusing this strided gather into kernel 1 is deferred -- see header.)
    xs = x_nchw[:, :, ::4, ::4]                            # (N, C, Hs, Ws)
    Hs, Ws = xs.shape[2], xs.shape[3]
    xp = xs.reshape(N, C, Hs * Ws)                         # free reshape

    logits = _run_mlp(xp, w1t, b1c, w2t, b2c, w3t, b3c)    # (N, K, Hs*Ws)
    small = logits.reshape(N * n_classes, Hs, Ws)          # free reshape

    a_h = _interp_matrix(Hs, OUT_H)                        # (256, Hs)
    a_wt = _interp_matrix(Ws, OUT_W).T                     # (Ws, 256)

    if upsample_bf16:
        # Optional (v5e/v7x, MXU-bound regime): ~2-3x on kernel 2 at ~1e-3
        # relative error.  Off by default to preserve f32 numerics.
        small = small.astype(jnp.bfloat16)
        a_h = a_h.astype(jnp.bfloat16)
        a_wt = a_wt.astype(jnp.bfloat16)

    big = _run_upsample(small, a_h, a_wt)                  # (N*K, 256, 256)
    return big.reshape(N, n_classes, OUT_H, OUT_W)


# ---------------------------------------------------------------------------
# Plain-JAX reference (module math, no Pallas) for a correctness check.
# ---------------------------------------------------------------------------
def _reference(x_nchw, mean, std, w1, b1, w2, b2, w3, b3):
    N, C, H, W = x_nchw.shape
    n_classes = w3.shape[1]
    xs = x_nchw[:, :, ::4, ::4]
    Hs, Ws = xs.shape[2], xs.shape[3]
    rows = jnp.transpose(xs, (0, 2, 3, 1)).reshape(-1, C)
    xn = (rows - mean) / std
    h1 = jnp.maximum(xn @ w1 + b1, 0.0)
    h2 = jnp.maximum(h1 @ w2 + b2, 0.0)
    o = h2 @ w3 + b3
    small = o.reshape(N, Hs, Ws, n_classes).transpose(0, 3, 1, 2)
    a_h = _interp_matrix(Hs, OUT_H)
    a_w = _interp_matrix(Ws, OUT_W)
    return jnp.einsum('oh,nchw,pw->ncop', a_h, small, a_w)


if __name__ == "__main__":
    # Small, deterministic synthetic config (in place of the .npy stats and
    # the fc_model checkpoint -- synthetic kernel test, no file I/O).
    N, C_in, H, W = 2, 4, 16, 16
    n_hidden, n_classes = 32, 2

    key = jax.random.PRNGKey(0)
    ks = jax.random.split(key, 9)
    x = jax.random.normal(ks[0], (N, C_in, H, W), dtype=jnp.float32)
    mean = jax.random.normal(ks[1], (1, C_in), dtype=jnp.float32) * 0.1
    std = jnp.abs(jax.random.normal(ks[2], (1, C_in), dtype=jnp.float32)) + 0.5
    w1 = jax.random.normal(ks[3], (C_in, n_hidden), dtype=jnp.float32) * 0.2
    b1 = jax.random.normal(ks[4], (1, n_hidden), dtype=jnp.float32) * 0.1
    w2 = jax.random.normal(ks[5], (n_hidden, n_hidden), dtype=jnp.float32) * 0.2
    b2 = jax.random.normal(ks[6], (1, n_hidden), dtype=jnp.float32) * 0.1
    w3 = jax.random.normal(ks[7], (n_hidden, n_classes), dtype=jnp.float32) * 0.2
    b3 = jax.random.normal(ks[8], (1, n_classes), dtype=jnp.float32) * 0.1

    out = dense_classifier_forward(x, mean, std, w1, b1, w2, b2, w3, b3,
                                   upsample_bf16=False)
    out = jax.block_until_ready(out)
    assert out.shape == (N, n_classes, OUT_H, OUT_W), out.shape

    ref = jax.block_until_ready(
        _reference(x, mean, std, w1, b1, w2, b2, w3, b3))
    assert jnp.allclose(out, ref, atol=1e-4, rtol=1e-4), "mismatch vs reference"

    print("KERNEL_OK")
</pallas_src>

<mosaic_0001>
module attributes {stable_mosaic.version = 11 : i64} {
  func.func @_mlp_kernel(%arg0: i32, %arg1: i32, %arg2: memref<1x4x16xf32, #tpu.memory_space<vmem>>, %arg3: memref<32x4xf32, #tpu.memory_space<vmem>>, %arg4: memref<32x1xf32, #tpu.memory_space<vmem>>, %arg5: memref<32x32xf32, #tpu.memory_space<vmem>>, %arg6: memref<32x1xf32, #tpu.memory_space<vmem>>, %arg7: memref<2x32xf32, #tpu.memory_space<vmem>>, %arg8: memref<2x1xf32, #tpu.memory_space<vmem>>, %arg9: memref<1x2x16xf32, #tpu.memory_space<vmem>>) attributes {dimension_semantics = [#tpu.dimension_semantics<parallel>, #tpu.dimension_semantics<parallel>], iteration_bounds = array<i64: 2, 1>, scalar_prefetch = 0 : i64, scratch_operands = 0 : i64, tpu.core_type = #tpu.core_type<tc>, window_params = [{transform_indices = @transform_0, window_bounds = array<i64: 1, 4, 16>}, {pipeline_mode = #tpu.pipeline_mode<synchronous>, transform_indices = @transform_1, window_bounds = array<i64: 32, 4>}, {pipeline_mode = #tpu.pipeline_mode<synchronous>, transform_indices = @transform_2, window_bounds = array<i64: 32, 1>}, {pipeline_mode = #tpu.pipeline_mode<synchronous>, transform_indices = @transform_3, window_bounds = array<i64: 32, 32>}, {pipeline_mode = #tpu.pipeline_mode<synchronous>, transform_indices = @transform_4, window_bounds = array<i64: 32, 1>}, {pipeline_mode = #tpu.pipeline_mode<synchronous>, transform_indices = @transform_5, window_bounds = array<i64: 2, 32>}, {pipeline_mode = #tpu.pipeline_mode<synchronous>, transform_indices = @transform_6, window_bounds = array<i64: 2, 1>}, {transform_indices = @transform_7, window_bounds = array<i64: 1, 2, 16>}]} {
    %c0 = arith.constant 0 : index
    %c0_0 = arith.constant 0 : index
    %0 = vector.load %arg4[%c0, %c0_0] : memref<32x1xf32, #tpu.memory_space<vmem>>, vector<32x1xf32>
    %1 = vector.shape_cast %0 : vector<32x1xf32> to vector<32x1xf32>
    %2 = vector.broadcast %1 : vector<32x1xf32> to vector<32x16xf32>
    %c0_1 = arith.constant 0 : index
    %c0_2 = arith.constant 0 : index
    %3 = vector.load %arg6[%c0_1, %c0_2] : memref<32x1xf32, #tpu.memory_space<vmem>>, vector<32x1xf32>
    %4 = vector.shape_cast %3 : vector<32x1xf32> to vector<32x1xf32>
    %5 = vector.broadcast %4 : vector<32x1xf32> to vector<32x16xf32>
    %c0_3 = arith.constant 0 : index
    %c0_4 = arith.constant 0 : index
    %6 = vector.load %arg8[%c0_3, %c0_4] : memref<2x1xf32, #tpu.memory_space<vmem>>, vector<2x1xf32>
    %7 = vector.shape_cast %6 : vector<2x1xf32> to vector<2x1xf32>
    %8 = vector.broadcast %7 : vector<2x1xf32> to vector<2x16xf32>
    %c0_5 = arith.constant 0 : index
    %c0_6 = arith.constant 0 : index
    %c0_7 = arith.constant 0 : index
    %9 = vector.load %arg2[%c0_5, %c0_6, %c0_7] : memref<1x4x16xf32, #tpu.memory_space<vmem>>, vector<1x4x16xf32>
    %10 = vector.shape_cast %9 : vector<1x4x16xf32> to vector<4x16xf32>
    %c0_8 = arith.constant 0 : index
    %c0_9 = arith.constant 0 : index
    %11 = vector.load %arg3[%c0_8, %c0_9] : memref<32x4xf32, #tpu.memory_space<vmem>>, vector<32x4xf32>
    %cst = arith.constant dense<0.000000e+00> : vector<32x16xf32>
    %12 = tpu.matmul %11, %10, %cst {dimension_numbers = #tpu.dot_dimension_numbers<[1], [0], [0], [1], [0, 0, 1, 1], [], []>} : vector<32x4xf32>, vector<4x16xf32>, vector<32x16xf32> -> vector<32x16xf32>
    %13 = arith.addf %12, %2 : vector<32x16xf32>
    %cst_10 = arith.constant 0.000000e+00 : f32
    %14 = vector.broadcast %cst_10 : f32 to vector<32x16xf32>
    %15 = arith.maximumf %13, %14 : vector<32x16xf32>
    %c0_11 = arith.constant 0 : index
    %c0_12 = arith.constant 0 : index
    %16 = vector.load %arg5[%c0_11, %c0_12] : memref<32x32xf32, #tpu.memory_space<vmem>>, vector<32x32xf32>
    %cst_13 = arith.constant dense<0.000000e+00> : vector<32x16xf32>
    %17 = tpu.matmul %16, %15, %cst_13 {dimension_numbers = #tpu.dot_dimension_numbers<[1], [0], [0], [1], [0, 0, 1, 1], [], []>} : vector<32x32xf32>, vector<32x16xf32>, vector<32x16xf32> -> vector<32x16xf32>
    %18 = arith.addf %17, %5 : vector<32x16xf32>
    %cst_14 = arith.constant 0.000000e+00 : f32
    %19 = vector.broadcast %cst_14 : f32 to vector<32x16xf32>
    %20 = arith.maximumf %18, %19 : vector<32x16xf32>
    %c0_15 = arith.constant 0 : index
    %c0_16 = arith.constant 0 : index
    %21 = vector.load %arg7[%c0_15, %c0_16] : memref<2x32xf32, #tpu.memory_space<vmem>>, vector<2x32xf32>
    %cst_17 = arith.constant dense<0.000000e+00> : vector<2x16xf32>
    %22 = tpu.matmul %21, %20, %cst_17 {dimension_numbers = #tpu.dot_dimension_numbers<[1], [0], [0], [1], [0, 0, 1, 1], [], []>} : vector<2x32xf32>, vector<32x16xf32>, vector<2x16xf32> -> vector<2x16xf32>
    %23 = arith.addf %22, %8 : vector<2x16xf32>
    %c0_18 = arith.constant 0 : index
    %c0_19 = arith.constant 0 : index
    %c0_20 = arith.constant 0 : index
    %24 = vector.load %arg9[%c0_18, %c0_19, %c0_20] : memref<1x2x16xf32, #tpu.memory_space<vmem>>, vector<1x2x16xf32>
    %25 = vector.shape_cast %24 : vector<1x2x16xf32> to vector<2x16xf32>
    %26 = vector.shape_cast %23 : vector<2x16xf32> to vector<1x2x16xf32>
    tpu.vector_store %arg9[%c0_18, %c0_19, %c0_20], %26 {strides = array<i32>} : memref<1x2x16xf32, #tpu.memory_space<vmem>>, vector<1x2x16xf32>,
    return
  }
  func.func @transform_0(%arg0: i32, %arg1: i32) -> (i32, i32, i32) {
    %c0_i32 = arith.constant 0 : i32
    %c0_i32_0 = arith.constant 0 : i32
    return %arg0, %c0_i32, %arg1 : i32, i32, i32
  }
  func.func @transform_1(%arg0: i32, %arg1: i32) -> (i32, i32) {
    %c0_i32 = arith.constant 0 : i32
    %c0_i32_0 = arith.constant 0 : i32
    %c0_i32_1 = arith.constant 0 : i32
    return %c0_i32, %c0_i32_0 : i32, i32
  }
  func.func @transform_2(%arg0: i32, %arg1: i32) -> (i32, i32) {
    %c0_i32 = arith.constant 0 : i32
    %c0_i32_0 = arith.constant 0 : i32
    %c0_i32_1 = arith.constant 0 : i32
    return %c0_i32, %c0_i32_0 : i32, i32
  }
  func.func @transform_3(%arg0: i32, %arg1: i32) -> (i32, i32) {
    %c0_i32 = arith.constant 0 : i32
    %c0_i32_0 = arith.constant 0 : i32
    %c0_i32_1 = arith.constant 0 : i32
    return %c0_i32, %c0_i32_0 : i32, i32
  }
  func.func @transform_4(%arg0: i32, %arg1: i32) -> (i32, i32) {
    %c0_i32 = arith.constant 0 : i32
    %c0_i32_0 = arith.constant 0 : i32
    %c0_i32_1 = arith.constant 0 : i32
    return %c0_i32, %c0_i32_0 : i32, i32
  }
  func.func @transform_5(%arg0: i32, %arg1: i32) -> (i32, i32) {
    %c0_i32 = arith.constant 0 : i32
    %c0_i32_0 = arith.constant 0 : i32
    %c0_i32_1 = arith.constant 0 : i32
    return %c0_i32, %c0_i32_0 : i32, i32
  }
  func.func @transform_6(%arg0: i32, %arg1: i32) -> (i32, i32) {
    %c0_i32 = arith.constant 0 : i32
    %c0_i32_0 = arith.constant 0 : i32
    %c0_i32_1 = arith.constant 0 : i32
    return %c0_i32, %c0_i32_0 : i32, i32
  }
  func.func @transform_7(%arg0: i32, %arg1: i32) -> (i32, i32, i32) {
    %c0_i32 = arith.constant 0 : i32
    %c0_i32_0 = arith.constant 0 : i32
    return %arg0, %c0_i32, %arg1 : i32, i32, i32
  }
}

module attributes {stable_mosaic.version = 11 : i64} {
  func.func @_upsample_kernel(%arg0: i32, %arg1: memref<2x4x4xf32, #tpu.memory_space<vmem>>, %arg2: memref<256x4xf32, #tpu.memory_space<vmem>>, %arg3: memref<4x256xf32, #tpu.memory_space<vmem>>, %arg4: memref<2x256x256xf32, #tpu.memory_space<vmem>>) attributes {dimension_semantics = [#tpu.dimension_semantics<parallel>], iteration_bounds = array<i64: 2>, scalar_prefetch = 0 : i64, scratch_operands = 0 : i64, tpu.core_type = #tpu.core_type<tc>, window_params = [{transform_indices = @transform_0, window_bounds = array<i64: 2, 4, 4>}, {pipeline_mode = #tpu.pipeline_mode<synchronous>, transform_indices = @transform_1, window_bounds = array<i64: 256, 4>}, {pipeline_mode = #tpu.pipeline_mode<synchronous>, transform_indices = @transform_2, window_bounds = array<i64: 4, 256>}, {transform_indices = @transform_3, window_bounds = array<i64: 2, 256, 256>}]} {
    %c0_i32 = arith.constant 0 : i32
    %c2_i32 = arith.constant 2 : i32
    %0 = arith.addi %c0_i32, %c2_i32 : i32
    %c1_i32 = arith.constant 1 : i32
    scf.for %arg5 = %c0_i32 to %0 step %c1_i32  : i32 {
      %1 = arith.index_cast %arg5 : i32 to index
      %c0 = arith.constant 0 : index
      %c0_1 = arith.constant 0 : index
      %2 = vector.load %arg1[%1, %c0, %c0_1] : memref<2x4x4xf32, #tpu.memory_space<vmem>>, vector<1x4x4xf32>
      %3 = vector.shape_cast %2 : vector<1x4x4xf32> to vector<4x4xf32>
      %c0_2 = arith.constant 0 : index
      %c0_3 = arith.constant 0 : index
      %4 = vector.load %arg3[%c0_2, %c0_3] : memref<4x256xf32, #tpu.memory_space<vmem>>, vector<4x256xf32>
      %cst = arith.constant dense<0.000000e+00> : vector<4x256xf32>
      %5 = tpu.matmul %3, %4, %cst {dimension_numbers = #tpu.dot_dimension_numbers<[1], [0], [0], [1], [0, 0, 1, 1], [], []>} : vector<4x4xf32>, vector<4x256xf32>, vector<4x256xf32> -> vector<4x256xf32>
      %c0_4 = arith.constant 0 : index
      %c0_5 = arith.constant 0 : index
      %6 = vector.load %arg2[%c0_4, %c0_5] : memref<256x4xf32, #tpu.memory_space<vmem>>, vector<256x4xf32>
      %cst_6 = arith.constant dense<0.000000e+00> : vector<256x256xf32>
      %7 = tpu.matmul %6, %5, %cst_6 {dimension_numbers = #tpu.dot_dimension_numbers<[1], [0], [0], [1], [0, 0, 1, 1], [], []>} : vector<256x4xf32>, vector<4x256xf32>, vector<256x256xf32> -> vector<256x256xf32>
      %8 = arith.index_cast %arg5 : i32 to index
      %c0_7 = arith.constant 0 : index
      %c0_8 = arith.constant 0 : index
      %9 = vector.load %arg4[%8, %c0_7, %c0_8] : memref<2x256x256xf32, #tpu.memory_space<vmem>>, vector<1x256x256xf32>
      %10 = vector.shape_cast %9 : vector<1x256x256xf32> to vector<256x256xf32>
      %11 = vector.shape_cast %7 : vector<256x256xf32> to vector<1x256x256xf32>
      tpu.vector_store %arg4[%8, %c0_7, %c0_8], %11 {strides = array<i32>} : memref<2x256x256xf32, #tpu.memory_space<vmem>>, vector<1x256x256xf32>,
    }
    %c2_i32_0 = arith.constant 2 : i32
    return
  }
  func.func @transform_0(%arg0: i32) -> (i32, i32, i32) {
    %c0_i32 = arith.constant 0 : i32
    %c0_i32_0 = arith.constant 0 : i32
    %c0_i32_1 = arith.constant 0 : i32
    return %arg0, %c0_i32, %c0_i32_0 : i32, i32, i32
  }
  func.func @transform_1(%arg0: i32) -> (i32, i32) {
    %c0_i32 = arith.constant 0 : i32
    %c0_i32_0 = arith.constant 0 : i32
    %c0_i32_1 = arith.constant 0 : i32
    return %c0_i32, %c0_i32_0 : i32, i32
  }
  func.func @transform_2(%arg0: i32) -> (i32, i32) {
    %c0_i32 = arith.constant 0 : i32
    %c0_i32_0 = arith.constant 0 : i32
    %c0_i32_1 = arith.constant 0 : i32
    return %c0_i32, %c0_i32_0 : i32, i32
  }
  func.func @transform_3(%arg0: i32) -> (i32, i32, i32) {
    %c0_i32 = arith.constant 0 : i32
    %c0_i32_0 = arith.constant 0 : i32
    %c0_i32_1 = arith.constant 0 : i32
    return %arg0, %c0_i32, %c0_i32_0 : i32, i32, i32
  }
}

</mosaic_0001>

<llo_original>
// kernel: dense_classifier_forward.2
$region0: #{dense_classifier_forward.2}
  #allocation0 [shape = 'u32[]', space=smem, size = 0x4, offset = 0x4, fixed_abs, tag = 'smem constant byte address 0x4 - core index']
  #allocation1 [shape = 'u32[72,128]{1,0:T(1,128)}', space=vmem, size = 0x9000, scoped, tag = 'internal scratch']
  %s0 = inlined_call_operand.vmem [shape: f32[2,4,16], index: 0, kind: input, shape index: {}]
  %s1 = inlined_call_operand.vmem [shape: f32[32,4], index: 1, kind: input, shape index: {}]
  %s2 = inlined_call_operand.vmem [shape: f32[32,1], index: 2, kind: input, shape index: {}]
  %s3 = inlined_call_operand.vmem [shape: f32[32,32], index: 3, kind: input, shape index: {}]
  %s4 = inlined_call_operand.vmem [shape: f32[32,1], index: 4, kind: input, shape index: {}]
  %s5 = inlined_call_operand.vmem [shape: f32[2,32], index: 5, kind: input, shape index: {}]
  %s6 = inlined_call_operand.vmem [shape: f32[2,1], index: 6, kind: input, shape index: {}]
  %s7 = inlined_call_operand.vmem [shape: f32[2,2,16], index: 7, kind: output, shape index: {}]
  %s8 = sld [smem:[#allocation0]]
  $region61: #{dense_classifier_forward.2} parent=0
    _
  %s10 = ssub.s32 1, %s8
  %s11 = scalar_select 0, %s10, %s8
  loop: start=0, step=1, limit=4
  $region2: #{dense_classifier_forward.2} parent=0 // loop_pre_header
    _
  $region3: #{dense_classifier_forward.2} parent=0 // loop_header
    %s13 = sphi 0, %s17
    %p14 = scmp.ge.s32.totalorder %s13, 4
    %s20 = sphi 0, %s32
    %s21 = sphi 0, %s28
    %s22 = sphi 0, %s20
    %s23 = sphi 0, %s21
    %s24 = sphi 0, %s22
    %s25 = sphi 0, %s23
    %s37 = sphi 0, %s39
    %s40 = sphi 0, %s37
    %s41 = sphi 0, %s40
    %s57 = sphi 0, %s41
    %s61 = sphi 0, %s61
    %s63 = sphi 0, %s61
    %s64 = sphi 0, %s63
    %s78 = sphi 0, %s64
    %s82 = sphi 0, %s82
    %s84 = sphi 0, %s82
    %s85 = sphi 0, %s84
    %s99 = sphi 0, %s85
    %s103 = sphi 0, %s103
    %s105 = sphi 0, %s103
    %s106 = sphi 0, %s105
    %s120 = sphi 0, %s106
    %s124 = sphi 0, %s124
    %s126 = sphi 0, %s124
    %s127 = sphi 0, %s126
    %s141 = sphi 0, %s127
    %s145 = sphi 0, %s145
    %s147 = sphi 0, %s145
    %s148 = sphi 0, %s147
    %s162 = sphi 0, %s148
    %s166 = sphi 0, %s166
    %s168 = sphi 0, %s166
    %s169 = sphi 0, %s168
    %s183 = sphi 0, %s169
    %s191 = sphi 0, %s193
    %s194 = sphi 0, %s191
    %s195 = sphi 0, %s194
    %s211 = sphi 0, %s195
  $region4: #{dense_classifier_forward.2} parent=0 // loop_header_branch
    %16 = sbr.rel (%p14) target = $region8
  $region5: #{dense_classifier_forward.2} parent=0 // loop_body
    %s18 = ssub.s32 %s13, 1
    %s19 = ssub.s32 %s13, 2
    %s26 = sadd.s32 1, %s21
    %p27 = scmp.ge.s32.totalorder %s26, 1
    %s28 = scalar_select %p27, 0, %s26
    %s29 = sadd.s32 1, %s20
    %s30 = scalar_select %p27, %s29, %s20
    %p31 = scmp.ge.s32.totalorder %s30, 2
    %s32 = scalar_select %p31, 0, %s30
    %s33 = ssub.s32 %s20, %s32
    %s34 = ssub.s32 %s21, %s28
    %s35 = sor.u32 %s33, %s34
    %p36 = scmp.eq.s32.totalorder %s35, 0
    %s38 = sadd.s32 %s37, 1
    %s39 = scalar_select %p36, %s37, %s38
    %p42 = pneg %p36
    %p43 = scmp.eq.s32.totalorder %s13, 1
    %p44 = por %p42, %p43
    %p45 = scmp.ne.s32.totalorder %s37, %s40
    %p46 = scmp.eq.s32.totalorder %s13, 0
    %p47 = por %p45, %p46
    %p48 = scmp.ne.s32.totalorder %s37, %s40
    %p49 = scmp.eq.s32.totalorder %s18, 1
    %p50 = por %p48, %p49
    %p51 = scmp.ne.s32.totalorder %s40, %s41
    %p52 = scmp.eq.s32.totalorder %s18, 0
    %p53 = por %p51, %p52
    %p54 = scmp.ne.s32.totalorder %s40, %s41
    %p55 = scmp.eq.s32.totalorder %s19, 1
    %p56 = por %p54, %p55
    %p58 = scmp.ne.s32.totalorder %s41, %s57
    %p59 = scmp.eq.s32.totalorder %s19, 0
    %p60 = por %p58, %p59
    %s62 = sadd.s32 %s61, 1
    %p65 = scmp.eq.s32.totalorder %s13, 1
    %p66 = scmp.ne.s32.totalorder %s61, %s63
    %p67 = scmp.eq.s32.totalorder %s13, 0
    %p68 = por %p66, %p67
    %p69 = scmp.ne.s32.totalorder %s61, %s63
    %p70 = scmp.eq.s32.totalorder %s18, 1
    %p71 = por %p69, %p70
    %p72 = scmp.ne.s32.totalorder %s63, %s64
    %p73 = scmp.eq.s32.totalorder %s18, 0
    %p74 = por %p72, %p73
    %p75 = scmp.ne.s32.totalorder %s63, %s64
    %p76 = scmp.eq.s32.totalorder %s19, 1
    %p77 = por %p75, %p76
    %p79 = scmp.ne.s32.totalorder %s64, %s78
    %p80 = scmp.eq.s32.totalorder %s19, 0
    %p81 = por %p79, %p80
    %s83 = sadd.s32 %s82, 1
    %p86 = scmp.eq.s32.totalorder %s13, 1
    %p87 = scmp.ne.s32.totalorder %s82, %s84
    %p88 = scmp.eq.s32.totalorder %s13, 0
    %p89 = por %p87, %p88
    %p90 = scmp.ne.s32.totalorder %s82, %s84
    %p91 = scmp.eq.s32.totalorder %s18, 1
    %p92 = por %p90, %p91
    %p93 = scmp.ne.s32.totalorder %s84, %s85
    %p94 = scmp.eq.s32.totalorder %s18, 0
    %p95 = por %p93, %p94
    %p96 = scmp.ne.s32.totalorder %s84, %s85
    %p97 = scmp.eq.s32.totalorder %s19, 1
    %p98 = por %p96, %p97
    %p100 = scmp.ne.s32.totalorder %s85, %s99
    %p101 = scmp.eq.s32.totalorder %s19, 0
    %p102 = por %p100, %p101
    %s104 = sadd.s32 %s103, 1
    %p107 = scmp.eq.s32.totalorder %s13, 1
    %p108 = scmp.ne.s32.totalorder %s103, %s105
    %p109 = scmp.eq.s32.totalorder %s13, 0
    %p110 = por %p108, %p109
    %p111 = scmp.ne.s32.totalorder %s103, %s105
    %p112 = scmp.eq.s32.totalorder %s18, 1
    %p113 = por %p111, %p112
    %p114 = scmp.ne.s32.totalorder %s105, %s106
    %p115 = scmp.eq.s32.totalorder %s18, 0
    %p116 = por %p114, %p115
    %p117 = scmp.ne.s32.totalorder %s105, %s106
    %p118 = scmp.eq.s32.totalorder %s19, 1
    %p119 = por %p117, %p118
    %p121 = scmp.ne.s32.totalorder %s106, %s120
    %p122 = scmp.eq.s32.totalorder %s19, 0
    %p123 = por %p121, %p122
    %s125 = sadd.s32 %s124, 1
    %p128 = scmp.eq.s32.totalorder %s13, 1
    %p129 = scmp.ne.s32.totalorder %s124, %s126
    %p130 = scmp.eq.s32.totalorder %s13, 0
    %p131 = por %p129, %p130
    %p132 = scmp.ne.s32.totalorder %s124, %s126
    %p133 = scmp.eq.s32.totalorder %s18, 1
    %p134 = por %p132, %p133
    %p135 = scmp.ne.s32.totalorder %s126, %s127
    %p136 = scmp.eq.s32.totalorder %s18, 0
    %p137 = por %p135, %p136
    %p138 = scmp.ne.s32.totalorder %s126, %s127
    %p139 = scmp.eq.s32.totalorder %s19, 1
    %p140 = por %p138, %p139
    %p142 = scmp.ne.s32.totalorder %s127, %s141
    %p143 = scmp.eq.s32.totalorder %s19, 0
    %p144 = por %p142, %p143
    %s146 = sadd.s32 %s145, 1
    %p149 = scmp.eq.s32.totalorder %s13, 1
    %p150 = scmp.ne.s32.totalorder %s145, %s147
    %p151 = scmp.eq.s32.totalorder %s13, 0
    %p152 = por %p150, %p151
    %p153 = scmp.ne.s32.totalorder %s145, %s147
    %p154 = scmp.eq.s32.totalorder %s18, 1
    %p155 = por %p153, %p154
    %p156 = scmp.ne.s32.totalorder %s147, %s148
    %p157 = scmp.eq.s32.totalorder %s18, 0
    %p158 = por %p156, %p157
    %p159 = scmp.ne.s32.totalorder %s147, %s148
    %p160 = scmp.eq.s32.totalorder %s19, 1
    %p161 = por %p159, %p160
    %p163 = scmp.ne.s32.totalorder %s148, %s162
    %p164 = scmp.eq.s32.totalorder %s19, 0
    %p165 = por %p163, %p164
    %s167 = sadd.s32 %s166, 1
    %p170 = scmp.eq.s32.totalorder %s13, 1
    %p171 = scmp.ne.s32.totalorder %s166, %s168
    %p172 = scmp.eq.s32.totalorder %s13, 0
    %p173 = por %p171, %p172
    %p174 = scmp.ne.s32.totalorder %s166, %s168
    %p175 = scmp.eq.s32.totalorder %s18, 1
    %p176 = por %p174, %p175
    %p177 = scmp.ne.s32.totalorder %s168, %s169
    %p178 = scmp.eq.s32.totalorder %s18, 0
    %p179 = por %p177, %p178
    %p180 = scmp.ne.s32.totalorder %s168, %s169
    %p181 = scmp.eq.s32.totalorder %s19, 1
    %p182 = por %p180, %p181
    %p184 = scmp.ne.s32.totalorder %s169, %s183
    %p185 = scmp.eq.s32.totalorder %s19, 0
    %p186 = por %p184, %p185
    %s187 = ssub.s32 %s20, %s32
    %s188 = ssub.s32 %s21, %s28
    %s189 = sor.u32 %s187, %s188
    %p190 = scmp.eq.s32.totalorder %s189, 0
    %s192 = sadd.s32 %s191, 1
    %s193 = scalar_select %p190, %s191, %s192
    %p196 = pneg %p190
    %p197 = scmp.eq.s32.totalorder %s13, 1
    %p198 = por %p196, %p197
    %p199 = scmp.ne.s32.totalorder %s191, %s194
    %p200 = scmp.eq.s32.totalorder %s13, 0
    %p201 = por %p199, %p200
    %p202 = scmp.ne.s32.totalorder %s191, %s194
    %p203 = scmp.eq.s32.totalorder %s18, 1
    %p204 = por %p202, %p203
    %p205 = scmp.ne.s32.totalorder %s194, %s195
    %p206 = scmp.eq.s32.totalorder %s18, 0
    %p207 = por %p205, %p206
    %p208 = scmp.ne.s32.totalorder %s194, %s195
    %p209 = scmp.eq.s32.totalorder %s19, 1
    %p210 = por %p208, %p209
    %p212 = scmp.ne.s32.totalorder %s195, %s211
    %p213 = scmp.eq.s32.totalorder %s19, 0
    %p214 = por %p212, %p213
    %p215 = scmp.le.s32.totalorder 1, %s13
    %p216 = scmp.lt.s32.totalorder %s13, 3
    %p217 = pnand %p215, %p216
    %p218 = pneg %p217
    // Predicated region
    $region9: #{dense_classifier_forward.2} parent=5 // pred_check
      _
    $region10: #{dense_classifier_forward.2} parent=5 // pred_check_branch
      %220 = sbr.rel (%p217) target = $region12
    $region11: #{dense_classifier_forward.2} parent=5 // pred_region
      %s221 = ssub.s32 %s13, 1
      // Predicated region
      $region13: #{dense_classifier_forward.2} parent=11 // pred_check
        %p222 = pneg %p74
      $region14: #{dense_classifier_forward.2} parent=11 // pred_check_branch
        %224 = sbr.rel (%p222) target = $region16
      $region15: #{dense_classifier_forward.2} parent=11 // pred_region
        _
      $region16: #{dense_classifier_forward.2} parent=11 // pred_fallthru
        _
      // Predicated region
      $region17: #{dense_classifier_forward.2} parent=11 // pred_check
        %p225 = pneg %p95
      $region18: #{dense_classifier_forward.2} parent=11 // pred_check_branch
        %227 = sbr.rel (%p225) target = $region20
      $region19: #{dense_classifier_forward.2} parent=11 // pred_region
        _
      $region20: #{dense_classifier_forward.2} parent=11 // pred_fallthru
        _
      // Predicated region
      $region21: #{dense_classifier_forward.2} parent=11 // pred_check
        %p228 = pneg %p116
      $region22: #{dense_classifier_forward.2} parent=11 // pred_check_branch
        %230 = sbr.rel (%p228) target = $region24
      $region23: #{dense_classifier_forward.2} parent=11 // pred_region
        _
      $region24: #{dense_classifier_forward.2} parent=11 // pred_fallthru
        _
      // Predicated region
      $region25: #{dense_classifier_forward.2} parent=11 // pred_check
        %p231 = pneg %p137
      $region26: #{dense_classifier_forward.2} parent=11 // pred_check_branch
        %233 = sbr.rel (%p231) target = $region28
      $region27: #{dense_classifier_forward.2} parent=11 // pred_region
        _
      $region28: #{dense_classifier_forward.2} parent=11 // pred_fallthru
        _
      // Predicated region
      $region29: #{dense_classifier_forward.2} parent=11 // pred_check
        %p234 = pneg %p158
      $region30: #{dense_classifier_forward.2} parent=11 // pred_check_branch
        %236 = sbr.rel (%p234) target = $region32
      $region31: #{dense_classifier_forward.2} parent=11 // pred_region
        _
      $region32: #{dense_classifier_forward.2} parent=11 // pred_fallthru
        _
      // Predicated region
      $region33: #{dense_classifier_forward.2} parent=11 // pred_check
        %p237 = pneg %p179
      $region34: #{dense_classifier_forward.2} parent=11 // pred_check_branch
        %239 = sbr.rel (%p237) target = $region36
      $region35: #{dense_classifier_forward.2} parent=11 // pred_region
        _
      $region36: #{dense_classifier_forward.2} parent=11 // pred_fallthru
        _
    $region12: #{dense_classifier_forward.2} parent=5 // pred_fallthru
      _
    %p240 = scmp.lt.s32.totalorder %s13, 2
    // Predicated region
    $region37: #{dense_classifier_forward.2} parent=5 // pred_check
      %p241 = pneg %p240
    $region38: #{dense_classifier_forward.2} parent=5 // pred_check_branch
      %243 = sbr.rel (%p241) target = $region40
    $region39: #{dense_classifier_forward.2} parent=5 // pred_region
      // Predicated region
      $region41: #{dense_classifier_forward.2} parent=39 // pred_check
        %p244 = pneg %p47
      $region42: #{dense_classifier_forward.2} parent=39 // pred_check_branch
        %246 = sbr.rel (%p244) target = $region44
      $region43: #{dense_classifier_forward.2} parent=39 // pred_region
        %p247 = scmp.lt.s32.totalorder %s20, 1
        %s248 = scalar_select %p247, %s20, 1
        %p249 = scmp.lt.s32.totalorder %s21, 0
        %s250 = scalar_select %p249, %s21, 0
        %s251 = sadd.s32 %s250, %s248
        %s252 = smul.addr %s251, 4
        %s253 = scalar_lea.vmem %s0, %s252
      $region44: #{dense_classifier_forward.2} parent=39 // pred_fallthru
        _
    $region40: #{dense_classifier_forward.2} parent=5 // pred_fallthru
      _
    %p254 = scmp.le.s32.totalorder 1, %s13
    %p255 = scmp.lt.s32.totalorder %s13, 3
    %p256 = pnand %p254, %p255
    %p257 = pneg %p256
    // Predicated region
    $region45: #{dense_classifier_forward.2} parent=5 // pred_check
      _
    $region46: #{dense_classifier_forward.2} parent=5 // pred_check_branch
      %259 = sbr.rel (%p256) target = $region48
    $region47: #{dense_classifier_forward.2} parent=5 // pred_region
      %s260 = ssub.s32 %s13, 1
      %p261 = scmp.lt.s32.totalorder %s22, 1
      %s262 = scalar_select %p261, %s22, 1
      %p263 = scmp.lt.s32.totalorder %s23, 0
      %s264 = scalar_select %p263, %s23, 0
      %s265 = sadd.s32 %s264, %s262
      %s266 = smul.addr %s265, 4
      %s267 = scalar_lea.vmem %s0, %s266
      %p268 = pneg %p53
      %p269 = pneg %p50
      %p270 = pneg %p74
      %p271 = pneg %p71
      %p272 = pneg %p95
      %p273 = pneg %p92
      %p274 = pneg %p116
      %p275 = pneg %p113
      %p276 = pneg %p137
      %p277 = pneg %p134
      %p278 = pneg %p158
      %p279 = pneg %p155
      %p280 = pneg %p179
      %p281 = pneg %p176
      %p282 = pneg %p207
      %p283 = pneg %p204
      %p284 = scmp.lt.s32.totalorder %s22, 1
      %s285 = scalar_select %p284, %s22, 1
      %p286 = scmp.lt.s32.totalorder %s23, 0
      %s287 = scalar_select %p286, %s23, 0
      %s288 = sadd.s32 %s287, %s285
      %s289 = smul.addr %s288, 2
      %s290 = scalar_lea.vmem %s7, %s289
      %p291 = scmp.lt.s32.totalorder %s22, 1
      %s292 = scalar_select %p291, %s22, 1
      %p293 = scmp.lt.s32.totalorder %s23, 0
      %s294 = scalar_select %p293, %s23, 0
      %s295 = sadd.s32 %s294, %s292
      %s296 = smul.addr %s295, 4
      %s297 = scalar_lea.vmem %s0, %s296
      %p298 = scmp.lt.s32.totalorder %s22, 1
      %s299 = scalar_select %p298, %s22, 1
      %p300 = scmp.lt.s32.totalorder %s23, 0
      %s301 = scalar_select %p300, %s23, 0
      %s302 = sadd.s32 %s301, %s299
      %s303 = smul.addr %s302, 2
      %s304 = scalar_lea.vmem %s7, %s303
      %v305 = vld [vmem:[%s2] sm:$0xff]
      %v306 = vld [vmem:[%s2 + $0x8] sm:$0xff]
      %v307 = vld [vmem:[%s2 + $0x10] sm:$0xff]
      %v308 = vld [vmem:[%s2 + $0x18] sm:$0xff]
      %310 = vset.pattern.permute.xlu0 0
      %311 = vperm.xlu0 %310, %v305
      %v312 = vpop.permute.xlu0 %311
      %315 = vset.pattern.permute.xlu0 0
      %316 = vperm.xlu0 %315, %v306
      %v317 = vpop.permute.xlu0 %316
      %320 = vset.pattern.permute.xlu0 0
      %321 = vperm.xlu0 %320, %v307
      %v322 = vpop.permute.xlu0 %321
      %325 = vset.pattern.permute.xlu0 0
      %326 = vperm.xlu0 %325, %v308
      %v327 = vpop.permute.xlu0 %326
      %v329 = vld [vmem:[%s4] sm:$0xff]
      %v330 = vld [vmem:[%s4 + $0x8] sm:$0xff]
      %v331 = vld [vmem:[%s4 + $0x10] sm:$0xff]
      %v332 = vld [vmem:[%s4 + $0x18] sm:$0xff]
      %334 = vset.pattern.permute.xlu0 0
      %335 = vperm.xlu0 %334, %v329
      %v336 = vpop.permute.xlu0 %335
      %339 = vset.pattern.permute.xlu0 0
      %340 = vperm.xlu0 %339, %v330
      %v341 = vpop.permute.xlu0 %340
      %344 = vset.pattern.permute.xlu0 0
      %345 = vperm.xlu0 %344, %v331
      %v346 = vpop.permute.xlu0 %345
      %349 = vset.pattern.permute.xlu0 0
      %350 = vperm.xlu0 %349, %v332
      %v351 = vpop.permute.xlu0 %350
      %v353 = vld [vmem:[%s6] sm:$0x3]
      %355 = vset.pattern.permute.xlu0 0
      %356 = vperm.xlu0 %355, %v353
      %v357 = vpop.permute.xlu0 %356
      %v359 = vld [vmem:[%s297] sm:$0xf]
      %v360 = vld [vmem:[%s1] sm:$0xff]
      %v361 = vld [vmem:[%s1 + $0x8] sm:$0xff]
      %v362 = vld [vmem:[%s1 + $0x10] sm:$0xff]
      %v363 = vld [vmem:[%s1 + $0x18] sm:$0xff]
      %vm364 = vcmask 31744
      %v366 = vsel %vm364, %v360, 0
      %v369 = vsel %vm364, %v361, 0
      %v372 = vsel %vm364, %v362, 0
      %v375 = vsel %vm364, %v363, 0
      %vm377 = vcmask 1043456
      %v379 = vsel %vm377, %v359, 0
      %381 = vmatpush.msra.mxu0 0.0
      %382 = vmatpush.msra.mxu0 0.0
      %383 = vmatpush.msra.mxu0 0.0
      %384 = vmatpush.msra.mxu0 0.0
      %385 = vmatpush.msra.mxu0 0.0
      %386 = vmatpush.msra.mxu0 0.0
      %387 = vmatpush.msra.mxu0 0.0
      %388 = vmatpush.msra.mxu0 0.0
      %389 = vmatpush.msra.mxu0 0.0
      %390 = vmatpush.msra.mxu0 0.0
      %391 = vmatpush.msra.mxu0 0.0
      %392 = vmatpush.msra.mxu0 0.0
      %393 = vmatpush.msra.mxu0 0.0
      %394 = vmatpush.msra.mxu0 0.0
      %395 = vmatpush.msra.mxu0 0.0
      %396 = vmatpush.msra.mxu0 %v379
      %397 = vmatmul.f32.gmra.mxu0 %v366
      %v398 = vpop.f32.mrf.mxu0
      %v399 = vadd.f32 %v312, %v398
      %400 = vmatmul.f32.gmra.mxu0 %v369
      %v401 = vpop.f32.mrf.mxu0
      %v402 = vadd.f32 %v317, %v401
      %403 = vmatmul.f32.gmra.mxu0 %v372
      %v404 = vpop.f32.mrf.mxu0
      %v405 = vadd.f32 %v322, %v404
      %406 = vmatmul.f32.gmra.mxu0 %v375
      %v407 = vpop.f32.mrf.mxu0
      %v408 = vadd.f32 %v327, %v407
      %409 = vdwg.mxu0
      %v410 = vmax.f32 %v399, 0.0
      %v411 = vmax.f32 %v402, 0.0
      %v412 = vmax.f32 %v405, 0.0
      %v413 = vmax.f32 %v408, 0.0
      %v414 = vld [vmem:[%s3] sm:$0xff]
      %v415 = vld [vmem:[%s3 + $0x8] sm:$0xff]
      %v416 = vld [vmem:[%s3 + $0x10] sm:$0xff]
      %v417 = vld [vmem:[%s3 + $0x18] sm:$0xff]
      %vm418 = vcmask 261120
      %v420 = vsel %vm418, %v414, 0
      %v423 = vsel %vm418, %v415, 0
      %v426 = vsel %vm418, %v416, 0
      %v429 = vsel %vm418, %v417, 0
      %431 = vmatpush.msra.mxu0 0.0
      %432 = vmatpush.msra.mxu0 0.0
      %433 = vmatpush.msra.mxu0 0.0
      %434 = vmatpush.msra.mxu0 0.0
      %435 = vmatpush.msra.mxu0 0.0
      %436 = vmatpush.msra.mxu0 0.0
      %437 = vmatpush.msra.mxu0 0.0
      %438 = vmatpush.msra.mxu0 0.0
      %439 = vmatpush.msra.mxu0 0.0
      %440 = vmatpush.msra.mxu0 0.0
      %441 = vmatpush.msra.mxu0 0.0
      %442 = vmatpush.msra.mxu0 0.0
      %443 = vmatpush.msra.mxu0 %v413
      %444 = vmatpush.msra.mxu0 %v412
      %445 = vmatpush.msra.mxu0 %v411
      %446 = vmatpush.msra.mxu0 %v410
      %447 = vmatmul.f32.gmra.mxu0 %v420
      %v448 = vpop.f32.mrf.mxu0
      %v449 = vadd.f32 %v336, %v448
      %450 = vmatmul.f32.gmra.mxu0 %v423
      %v451 = vpop.f32.mrf.mxu0
      %v452 = vadd.f32 %v341, %v451
      %453 = vmatmul.f32.gmra.mxu0 %v426
      %v454 = vpop.f32.mrf.mxu0
      %v455 = vadd.f32 %v346, %v454
      %456 = vmatmul.f32.gmra.mxu0 %v429
      %v457 = vpop.f32.mrf.mxu0
      %v458 = vadd.f32 %v351, %v457
      %459 = vdwg.mxu0
      %v460 = vmax.f32 %v449, 0.0
      %v461 = vmax.f32 %v452, 0.0
      %v462 = vmax.f32 %v455, 0.0
      %v463 = vmax.f32 %v458, 0.0
      %v464 = vld [vmem:[%s5] sm:$0x3]
      %v466 = vsel %vm418, %v464, 0
      %468 = vmatpush.msra.mxu0 0.0
      %469 = vmatpush.msra.mxu0 0.0
      %470 = vmatpush.msra.mxu0 0.0
      %471 = vmatpush.msra.mxu0 0.0
      %472 = vmatpush.msra.mxu0 0.0
      %473 = vmatpush.msra.mxu0 0.0
      %474 = vmatpush.msra.mxu0 0.0
      %475 = vmatpush.msra.mxu0 0.0
      %476 = vmatpush.msra.mxu0 0.0
      %477 = vmatpush.msra.mxu0 0.0
      %478 = vmatpush.msra.mxu0 0.0
      %479 = vmatpush.msra.mxu0 0.0
      %480 = vmatpush.msra.mxu0 %v463
      %481 = vmatpush.msra.mxu0 %v462
      %482 = vmatpush.msra.mxu0 %v461
      %483 = vmatpush.msra.mxu0 %v460
      %484 = vmatmul.f32.gmra.mxu0 %v466
      %v485 = vpop.f32.mrf.mxu0
      %v486 = vadd.f32 %v357, %v485
      %487 = vdwg.mxu0
      %vm488 = vcmask 123904
      %489 = vst.msk [vmem:[%s304] sm:$0x3] %vm488, %v486
      %p490 = scmp.lt.s32.totalorder %s22, 1
      %s491 = scalar_select %p490, %s22, 1
      %p492 = scmp.lt.s32.totalorder %s23, 0
      %s493 = scalar_select %p492, %s23, 0
      %s494 = sadd.s32 %s493, %s491
      %s495 = smul.addr %s494, 2
      %s496 = scalar_lea.vmem %s7, %s495
      // Predicated region
      $region49: #{dense_classifier_forward.2} parent=47 // pred_check
        %p497 = pneg %p204
      $region50: #{dense_classifier_forward.2} parent=47 // pred_check_branch
        %499 = sbr.rel (%p497) target = $region52
      $region51: #{dense_classifier_forward.2} parent=47 // pred_region
        _
      $region52: #{dense_classifier_forward.2} parent=47 // pred_fallthru
        _
    $region48: #{dense_classifier_forward.2} parent=5 // pred_fallthru
      _
    %p500 = scmp.le.s32.totalorder 2, %s13
    // Predicated region
    $region53: #{dense_classifier_forward.2} parent=5 // pred_check
      %p501 = pneg %p500
    $region54: #{dense_classifier_forward.2} parent=5 // pred_check_branch
      %503 = sbr.rel (%p501) target = $region56
    $region55: #{dense_classifier_forward.2} parent=5 // pred_region
      %s504 = ssub.s32 %s13, 2
      // Predicated region
      $region57: #{dense_classifier_forward.2} parent=55 // pred_check
        %p505 = pneg %p210
      $region58: #{dense_classifier_forward.2} parent=55 // pred_check_branch
        %507 = sbr.rel (%p505) target = $region60
      $region59: #{dense_classifier_forward.2} parent=55 // pred_region
        %p508 = scmp.lt.s32.totalorder %s24, 1
        %s509 = scalar_select %p508, %s24, 1
        %p510 = scmp.lt.s32.totalorder %s25, 0
        %s511 = scalar_select %p510, %s25, 0
        %s512 = sadd.s32 %s511, %s509
        %s513 = smul.addr %s512, 2
        %s514 = scalar_lea.vmem %s7, %s513
      $region60: #{dense_classifier_forward.2} parent=55 // pred_fallthru
        _
    $region56: #{dense_classifier_forward.2} parent=5 // pred_fallthru
      _
  $region6: #{dense_classifier_forward.2} parent=0 // loop_footer
    %s17 = sadd.s32 1, %s13
  $region7: #{dense_classifier_forward.2} parent=0 // loop_footer_branch
    %12 = sbr.rel target = $region3
  $region8: #{dense_classifier_forward.2} parent=0 // loop_exit
    _

// kernel: dense_classifier_forward.3
$region0: #{dense_classifier_forward.3}
  #allocation0 [shape = 'u32[]', space=smem, size = 0x4, offset = 0x4, fixed_abs, tag = 'smem constant byte address 0x4 - core index']
  #allocation1 [shape = 'u32[72,128]{1,0:T(1,128)}', space=vmem, size = 0x9000, scoped, tag = 'internal scratch']
  %s0 = inlined_call_operand.vmem [shape: f32[4,4,4], index: 0, kind: input, shape index: {}]
  %s1 = inlined_call_operand.vmem [shape: f32[256,4], index: 1, kind: input, shape index: {}]
  %s2 = inlined_call_operand.vmem [shape: f32[4,256], index: 2, kind: input, shape index: {}]
  %s3 = inlined_call_operand.hbm [shape: f32[4,256,256], index: 3, kind: output, shape index: {}]
  %s4 = sld [smem:[#allocation0]]
  $region52: #{dense_classifier_forward.3} parent=0
    _
  %s6 = ssub.s32 1, %s4
  %s7 = scalar_select 0, %s6, %s4
  $region1: #{dense_classifier_forward.3} parent=0
    #allocation2 [shape = 'u8[1048576]{0}', space=vmem, size = 0x100000, scoped, tag = 'output window, operand 0']
    #allocation3 [shape = 's32[2]{0}', space=sflag, size = 0x8, scoped, tag = 'scoped memory for dense_classifier_forward.3']
    %8 = vsyncpa [#allocation3], 0
    %s9 = scalar_lea.sflag [#allocation3], 1
    %10 = vsyncpa %s9, 0
    loop: start=0, step=1, limit=4
    $region2: #{dense_classifier_forward.3} parent=1 // loop_pre_header
      _
    $region3: #{dense_classifier_forward.3} parent=1 // loop_header
      %s12 = sphi 0, %s16
      %p13 = scmp.ge.s32.totalorder %s12, 4
      %s22 = sphi 0, %s24
      %s25 = sphi 0, %s22
      %s26 = sphi 0, %s25
      %s42 = sphi 0, %s26
      %s46 = sphi 0, %s46
      %s48 = sphi 0, %s46
      %s49 = sphi 0, %s48
      %s63 = sphi 0, %s49
      %s67 = sphi 0, %s67
      %s69 = sphi 0, %s67
      %s70 = sphi 0, %s69
      %s84 = sphi 0, %s70
      %s90 = sphi 0, %s92
      %s93 = sphi 0, %s90
      %s94 = sphi 0, %s93
      %s110 = sphi 0, %s94
    $region4: #{dense_classifier_forward.3} parent=1 // loop_header_branch
      %15 = sbr.rel (%p13) target = $region8
    $region5: #{dense_classifier_forward.3} parent=1 // loop_body
      %s17 = ssub.s32 %s12, 1
      %s18 = ssub.s32 %s12, 2
      %s19 = sadd.s32 %s12, 1
      %s20 = ssub.s32 %s12, %s19
      %p21 = scmp.eq.s32.totalorder %s20, 0
      %s23 = sadd.s32 %s22, 1
      %s24 = scalar_select %p21, %s22, %s23
      %p27 = pneg %p21
      %p28 = scmp.eq.s32.totalorder %s12, 1
      %p29 = por %p27, %p28
      %p30 = scmp.ne.s32.totalorder %s22, %s25
      %p31 = scmp.eq.s32.totalorder %s12, 0
      %p32 = por %p30, %p31
      %p33 = scmp.ne.s32.totalorder %s22, %s25
      %p34 = scmp.eq.s32.totalorder %s17, 1
      %p35 = por %p33, %p34
      %p36 = scmp.ne.s32.totalorder %s25, %s26
      %p37 = scmp.eq.s32.totalorder %s17, 0
      %p38 = por %p36, %p37
      %p39 = scmp.ne.s32.totalorder %s25, %s26
      %p40 = scmp.eq.s32.totalorder %s18, 1
      %p41 = por %p39, %p40
      %p43 = scmp.ne.s32.totalorder %s26, %s42
      %p44 = scmp.eq.s32.totalorder %s18, 0
      %p45 = por %p43, %p44
      %s47 = sadd.s32 %s46, 1
      %p50 = scmp.eq.s32.totalorder %s12, 1
      %p51 = scmp.ne.s32.totalorder %s46, %s48
      %p52 = scmp.eq.s32.totalorder %s12, 0
      %p53 = por %p51, %p52
      %p54 = scmp.ne.s32.totalorder %s46, %s48
      %p55 = scmp.eq.s32.totalorder %s17, 1
      %p56 = por %p54, %p55
      %p57 = scmp.ne.s32.totalorder %s48, %s49
      %p58 = scmp.eq.s32.totalorder %s17, 0
      %p59 = por %p57, %p58
      %p60 = scmp.ne.s32.totalorder %s48, %s49
      %p61 = scmp.eq.s32.totalorder %s18, 1
      %p62 = por %p60, %p61
      %p64 = scmp.ne.s32.totalorder %s49, %s63
      %p65 = scmp.eq.s32.totalorder %s18, 0
      %p66 = por %p64, %p65
      %s68 = sadd.s32 %s67, 1
      %p71 = scmp.eq.s32.totalorder %s12, 1
      %p72 = scmp.ne.s32.totalorder %s67, %s69
      %p73 = scmp.eq.s32.totalorder %s12, 0
      %p74 = por %p72, %p73
      %p75 = scmp.ne.s32.totalorder %s67, %s69
      %p76 = scmp.eq.s32.totalorder %s17, 1
      %p77 = por %p75, %p76
      %p78 = scmp.ne.s32.totalorder %s69, %s70
      %p79 = scmp.eq.s32.totalorder %s17, 0
      %p80 = por %p78, %p79
      %p81 = scmp.ne.s32.totalorder %s69, %s70
      %p82 = scmp.eq.s32.totalorder %s18, 1
      %p83 = por %p81, %p82
      %p85 = scmp.ne.s32.totalorder %s70, %s84
      %p86 = scmp.eq.s32.totalorder %s18, 0
      %p87 = por %p85, %p86
      %s88 = ssub.s32 %s12, %s19
      %p89 = scmp.eq.s32.totalorder %s88, 0
      %s91 = sadd.s32 %s90, 1
      %s92 = scalar_select %p89, %s90, %s91
      %p95 = pneg %p89
      %p96 = scmp.eq.s32.totalorder %s12, 1
      %p97 = por %p95, %p96
      %p98 = scmp.ne.s32.totalorder %s90, %s93
      %p99 = scmp.eq.s32.totalorder %s12, 0
      %p100 = por %p98, %p99
      %p101 = scmp.ne.s32.totalorder %s90, %s93
      %p102 = scmp.eq.s32.totalorder %s17, 1
      %p103 = por %p101, %p102
      %p104 = scmp.ne.s32.totalorder %s93, %s94
      %p105 = scmp.eq.s32.totalorder %s17, 0
      %p106 = por %p104, %p105
      %p107 = scmp.ne.s32.totalorder %s93, %s94
      %p108 = scmp.eq.s32.totalorder %s18, 1
      %p109 = por %p107, %p108
      %p111 = scmp.ne.s32.totalorder %s94, %s110
      %p112 = scmp.eq.s32.totalorder %s18, 0
      %p113 = por %p111, %p112
      %p114 = scmp.le.s32.totalorder 1, %s12
      %p115 = scmp.lt.s32.totalorder %s12, 3
      %p116 = pnand %p114, %p115
      %p117 = pneg %p116
      // Predicated region
      $region9: #{dense_classifier_forward.3} parent=5 // pred_check
        _
      $region10: #{dense_classifier_forward.3} parent=5 // pred_check_branch
        %119 = sbr.rel (%p116) target = $region12
      $region11: #{dense_classifier_forward.3} parent=5 // pred_region
        %s120 = ssub.s32 %s12, 1
        // Predicated region
        $region13: #{dense_classifier_forward.3} parent=11 // pred_check
          %p121 = pneg %p59
        $region14: #{dense_classifier_forward.3} parent=11 // pred_check_branch
          %123 = sbr.rel (%p121) target = $region16
        $region15: #{dense_classifier_forward.3} parent=11 // pred_region
          _
        $region16: #{dense_classifier_forward.3} parent=11 // pred_fallthru
          _
        // Predicated region
        $region17: #{dense_classifier_forward.3} parent=11 // pred_check
          %p124 = pneg %p80
        $region18: #{dense_classifier_forward.3} parent=11 // pred_check_branch
          %126 = sbr.rel (%p124) target = $region20
        $region19: #{dense_classifier_forward.3} parent=11 // pred_region
          _
        $region20: #{dense_classifier_forward.3} parent=11 // pred_fallthru
          _
      $region12: #{dense_classifier_forward.3} parent=5 // pred_fallthru
        _
      %p127 = scmp.lt.s32.totalorder %s12, 2
      // Predicated region
      $region21: #{dense_classifier_forward.3} parent=5 // pred_check
        %p128 = pneg %p127
      $region22: #{dense_classifier_forward.3} parent=5 // pred_check_branch
        %130 = sbr.rel (%p128) target = $region24
      $region23: #{dense_classifier_forward.3} parent=5 // pred_region
        // Predicated region
        $region25: #{dense_classifier_forward.3} parent=23 // pred_check
          %p131 = pneg %p32
        $region26: #{dense_classifier_forward.3} parent=23 // pred_check_branch
          %133 = sbr.rel (%p131) target = $region28
        $region27: #{dense_classifier_forward.3} parent=23 // pred_region
          %s134 = smul.u32 2, %s12
          %p135 = scmp.lt.s32.totalorder %s134, 3
          %s136 = scalar_select %p135, %s134, 3
          %s137 = smul.addr %s136, 4
          %s138 = scalar_lea.vmem %s0, %s137
          %s139 = smul.u32 2, %s12
        $region28: #{dense_classifier_forward.3} parent=23 // pred_fallthru
          _
      $region24: #{dense_classifier_forward.3} parent=5 // pred_fallthru
        _
      %p140 = scmp.le.s32.totalorder 1, %s12
      %p141 = scmp.lt.s32.totalorder %s12, 3
      %p142 = pnand %p140, %p141
      %p143 = pneg %p142
      // Predicated region
      $region29: #{dense_classifier_forward.3} parent=5 // pred_check
        _
      $region30: #{dense_classifier_forward.3} parent=5 // pred_check_branch
        %145 = sbr.rel (%p142) target = $region32
      $region31: #{dense_classifier_forward.3} parent=5 // pred_region
        %s146 = ssub.s32 %s12, 1
        %s147 = smul.u32 2, %s17
        %p148 = scmp.lt.s32.totalorder %s147, 3
        %s149 = scalar_select %p148, %s147, 3
        %s150 = smul.addr %s149, 4
        %s151 = scalar_lea.vmem %s0, %s150
        %p152 = pneg %p38
        %p153 = pneg %p35
        %p154 = pneg %p59
        %p155 = pneg %p56
        %p156 = pneg %p80
        %p157 = pneg %p77
        %p158 = pneg %p106
        %p159 = pneg %p103
        %s160 = sand.u32 %s93, 1
        %s161 = scalar_lea.sflag [#allocation3], %s160
        %s162 = sand.u32 %s93, 1
        %s163 = smul.addr %s162, 1024
        %s164 = scalar_lea.vmem [#allocation2], %s163
        %s165 = smul.u32 2, %s17
        %p166 = scmp.lt.s32.totalorder %s165, 3
        %s167 = scalar_select %p166, %s165, 3
        %s168 = smul.addr %s167, 4
        %s169 = scalar_lea.vmem %s0, %s168
        %s170 = smul.u32 2, %s17
        %s171 = smul.u32 2, %s17
        loop: start=0, step=1, limit=2
        $region33: #{dense_classifier_forward.3} parent=31 // loop_pre_header
          _
        $region34: #{dense_classifier_forward.3} parent=31 // loop_header
          %s173 = sphi 0, %s177
          %p174 = scmp.ge.s32.totalorder %s173, 2
        $region35: #{dense_classifier_forward.3} parent=31 // loop_header_branch
          %176 = sbr.rel (%p174) target = $region39
        $region36: #{dense_classifier_forward.3} parent=31 // loop_body
          %s178 = smul.u32 %s173, 4
          %s179 = scalar_lea.vmem %s169, %s178
          %v180 = vld [vmem:[%s179] sm:$0xf]
          %v181 = vld [vmem:[%s2] sm:$0xff]
          %183 = vst [vmem:[#allocation1] ss:$2 sm:$0xff] %v181
          %v184 = vld.sshfl [vmem:[#allocation1] sm:$0xff pattern:$0x75316420]
          %v185 = vld.sshfl [vmem:[#allocation1 + $0x8] sm:$0xff pattern:$0x75316420]
          %vm186 = vcmask 31744
          %v188 = vsel %vm186, %v180, 0
          %vm190 = vcmask 1043456
          %v191 = vsel %vm190, %v184, 0
          %v193 = vsel %vm190, %v185, 0
          %195 = vmatpush.msra.mxu0 0.0
          %196 = vmatpush.msra.mxu0 0.0
          %197 = vmatpush.msra.mxu0 0.0
          %198 = vmatpush.msra.mxu0 0.0
          %199 = vmatpush.msra.mxu0 0.0
          %200 = vmatpush.msra.mxu0 0.0
          %201 = vmatpush.msra.mxu0 0.0
          %202 = vmatpush.msra.mxu0 0.0
          %203 = vmatpush.msra.mxu0 0.0
          %204 = vmatpush.msra.mxu0 0.0
          %205 = vmatpush.msra.mxu0 0.0
          %206 = vmatpush.msra.mxu0 0.0
          %207 = vmatpush.msra.mxu0 0.0
          %208 = vmatpush.msra.mxu0 0.0
          %209 = vmatpush.msra.mxu0 0.0
          %210 = vmatpush.msra.mxu0 %v191
          %211 = vmatmul.f32.gmra.mxu0 %v188
          %v212 = vpop.f32.mrf.mxu0
          %v213 = vadd.f32 0.0, %v212
          %214 = vdwg.mxu0
          %215 = vmatpush.msra.mxu0 0.0
          %216 = vmatpush.msra.mxu0 0.0
          %217 = vmatpush.msra.mxu0 0.0
          %218 = vmatpush.msra.mxu0 0.0
          %219 = vmatpush.msra.mxu0 0.0
          %220 = vmatpush.msra.mxu0 0.0
          %221 = vmatpush.msra.mxu0 0.0
          %222 = vmatpush.msra.mxu0 0.0
          %223 = vmatpush.msra.mxu0 0.0
          %224 = vmatpush.msra.mxu0 0.0
          %225 = vmatpush.msra.mxu0 0.0
          %226 = vmatpush.msra.mxu0 0.0
          %227 = vmatpush.msra.mxu0 0.0
          %228 = vmatpush.msra.mxu0 0.0
          %229 = vmatpush.msra.mxu0 0.0
          %230 = vmatpush.msra.mxu0 %v193
          %231 = vmatmul.f32.gmra.mxu0 %v188
          %v232 = vpop.f32.mrf.mxu0
          %v233 = vadd.f32 0.0, %v232
          %234 = vdwg.mxu0
          %v235 = vld [vmem:[%s1] sm:$0xff]
          %v236 = vld [vmem:[%s1 + $0x8] sm:$0xff]
          %v237 = vld [vmem:[%s1 + $0x10] sm:$0xff]
          %v238 = vld [vmem:[%s1 + $0x18] sm:$0xff]
          %v239 = vld [vmem:[%s1 + $0x20] sm:$0xff]
          %v240 = vld [vmem:[%s1 + $0x28] sm:$0xff]
          %v241 = vld [vmem:[%s1 + $0x30] sm:$0xff]
          %v242 = vld [vmem:[%s1 + $0x38] sm:$0xff]
          %v243 = vld [vmem:[%s1 + $0x40] sm:$0xff]
          %v244 = vld [vmem:[%s1 + $0x48] sm:$0xff]
          %v245 = vld [vmem:[%s1 + $0x50] sm:$0xff]
          %v246 = vld [vmem:[%s1 + $0x58] sm:$0xff]
          %v247 = vld [vmem:[%s1 + $0x60] sm:$0xff]
          %v248 = vld [vmem:[%s1 + $0x68] sm:$0xff]
          %v249 = vld [vmem:[%s1 + $0x70] sm:$0xff]
          %v250 = vld [vmem:[%s1 + $0x78] sm:$0xff]
          %v251 = vld [vmem:[%s1 + $0x80] sm:$0xff]
          %v252 = vld [vmem:[%s1 + $0x88] sm:$0xff]
          %v253 = vld [vmem:[%s1 + $0x90] sm:$0xff]
          %v254 = vld [vmem:[%s1 + $0x98] sm:$0xff]
          %v255 = vld [vmem:[%s1 + $0xa0] sm:$0xff]
          %v256 = vld [vmem:[%s1 + $0xa8] sm:$0xff]
          %v257 = vld [vmem:[%s1 + $0xb0] sm:$0xff]
          %v258 = vld [vmem:[%s1 + $0xb8] sm:$0xff]
          %v259 = vld [vmem:[%s1 + $0xc0] sm:$0xff]
          %v260 = vld [vmem:[%s1 + $0xc8] sm:$0xff]
          %v261 = vld [vmem:[%s1 + $0xd0] sm:$0xff]
          %v262 = vld [vmem:[%s1 + $0xd8] sm:$0xff]
          %v263 = vld [vmem:[%s1 + $0xe0] sm:$0xff]
          %v264 = vld [vmem:[%s1 + $0xe8] sm:$0xff]
          %v265 = vld [vmem:[%s1 + $0xf0] sm:$0xff]
          %v266 = vld [vmem:[%s1 + $0xf8] sm:$0xff]
          %v268 = vsel %vm186, %v235, 0
          %v271 = vsel %vm186, %v236, 0
          %v274 = vsel %vm186, %v237, 0
          %v277 = vsel %vm186, %v238, 0
          %v280 = vsel %vm186, %v239, 0
          %v283 = vsel %vm186, %v240, 0
          %v286 = vsel %vm186, %v241, 0
          %v289 = vsel %vm186, %v242, 0
          %v292 = vsel %vm186, %v243, 0
          %v295 = vsel %vm186, %v244, 0
          %v298 = vsel %vm186, %v245, 0
          %v301 = vsel %vm186, %v246, 0
          %v304 = vsel %vm186, %v247, 0
          %v307 = vsel %vm186, %v248, 0
          %v310 = vsel %vm186, %v249, 0
          %v313 = vsel %vm186, %v250, 0
          %v316 = vsel %vm186, %v251, 0
          %v319 = vsel %vm186, %v252, 0
          %v322 = vsel %vm186, %v253, 0
          %v325 = vsel %vm186, %v254, 0
          %v328 = vsel %vm186, %v255, 0
          %v331 = vsel %vm186, %v256, 0
          %v334 = vsel %vm186, %v257, 0
          %v337 = vsel %vm186, %v258, 0
          %v340 = vsel %vm186, %v259, 0
          %v343 = vsel %vm186, %v260, 0
          %v346 = vsel %vm186, %v261, 0
          %v349 = vsel %vm186, %v262, 0
          %v352 = vsel %vm186, %v263, 0
          %v355 = vsel %vm186, %v264, 0
          %v358 = vsel %vm186, %v265, 0
          %v361 = vsel %vm186, %v266, 0
          %v364 = vsel %vm190, %v213, 0
          %v367 = vsel %vm190, %v233, 0
          %369 = vmatpush.msra.mxu0 0.0
          %370 = vmatpush.msra.mxu0 0.0
          %371 = vmatpush.msra.mxu0 0.0
          %372 = vmatpush.msra.mxu0 0.0
          %373 = vmatpush.msra.mxu0 0.0
          %374 = vmatpush.msra.mxu0 0.0
          %375 = vmatpush.msra.mxu0 0.0
          %376 = vmatpush.msra.mxu0 0.0
          %377 = vmatpush.msra.mxu0 0.0
          %378 = vmatpush.msra.mxu0 0.0
          %379 = vmatpush.msra.mxu0 0.0
          %380 = vmatpush.msra.mxu0 0.0
          %381 = vmatpush.msra.mxu0 0.0
          %382 = vmatpush.msra.mxu0 0.0
          %383 = vmatpush.msra.mxu0 0.0
          %384 = vmatpush.msra.mxu0 %v364
          %385 = vmatmul.f32.gmra.mxu0 %v268
          %v386 = vpop.f32.mrf.mxu0
          %v387 = vadd.f32 0.0, %v386
          %388 = vmatmul.f32.gmra.mxu0 %v271
          %v389 = vpop.f32.mrf.mxu0
          %v390 = vadd.f32 0.0, %v389
          %391 = vmatmul.f32.gmra.mxu0 %v274
          %v392 = vpop.f32.mrf.mxu0
          %v393 = vadd.f32 0.0, %v392
          %394 = vmatmul.f32.gmra.mxu0 %v277
          %v395 = vpop.f32.mrf.mxu0
          %v396 = vadd.f32 0.0, %v395
          %397 = vmatmul.f32.gmra.mxu0 %v280
          %v398 = vpop.f32.mrf.mxu0
          %v399 = vadd.f32 0.0, %v398
          %400 = vmatmul.f32.gmra.mxu0 %v283
          %v401 = vpop.f32.mrf.mxu0
          %v402 = vadd.f32 0.0, %v401
          %403 = vmatmul.f32.gmra.mxu0 %v286
          %v404 = vpop.f32.mrf.mxu0
          %v405 = vadd.f32 0.0, %v404
          %406 = vmatmul.f32.gmra.mxu0 %v289
          %v407 = vpop.f32.mrf.mxu0
          %v408 = vadd.f32 0.0, %v407
          %409 = vmatmul.f32.gmra.mxu0 %v292
          %v410 = vpop.f32.mrf.mxu0
          %v411 = vadd.f32 0.0, %v410
          %412 = vmatmul.f32.gmra.mxu0 %v295
          %v413 = vpop.f32.mrf.mxu0
          %v414 = vadd.f32 0.0, %v413
          %415 = vmatmul.f32.gmra.mxu0 %v298
          %v416 = vpop.f32.mrf.mxu0
          %v417 = vadd.f32 0.0, %v416
          %418 = vmatmul.f32.gmra.mxu0 %v301
          %v419 = vpop.f32.mrf.mxu0
          %v420 = vadd.f32 0.0, %v419
          %421 = vmatmul.f32.gmra.mxu0 %v304
          %v422 = vpop.f32.mrf.mxu0
          %v423 = vadd.f32 0.0, %v422
          %424 = vmatmul.f32.gmra.mxu0 %v307
          %v425 = vpop.f32.mrf.mxu0
          %v426 = vadd.f32 0.0, %v425
          %427 = vmatmul.f32.gmra.mxu0 %v310
          %v428 = vpop.f32.mrf.mxu0
          %v429 = vadd.f32 0.0, %v428
          %430 = vmatmul.f32.gmra.mxu0 %v313
          %v431 = vpop.f32.mrf.mxu0
          %v432 = vadd.f32 0.0, %v431
          %433 = vmatmul.f32.gmra.mxu0 %v316
          %v434 = vpop.f32.mrf.mxu0
          %v435 = vadd.f32 0.0, %v434
          %436 = vmatmul.f32.gmra.mxu0 %v319
          %v437 = vpop.f32.mrf.mxu0
          %v438 = vadd.f32 0.0, %v437
          %439 = vmatmul.f32.gmra.mxu0 %v322
          %v440 = vpop.f32.mrf.mxu0
          %v441 = vadd.f32 0.0, %v440
          %442 = vmatmul.f32.gmra.mxu0 %v325
          %v443 = vpop.f32.mrf.mxu0
          %v444 = vadd.f32 0.0, %v443
          %445 = vmatmul.f32.gmra.mxu0 %v328
          %v446 = vpop.f32.mrf.mxu0
          %v447 = vadd.f32 0.0, %v446
          %448 = vmatmul.f32.gmra.mxu0 %v331
          %v449 = vpop.f32.mrf.mxu0
          %v450 = vadd.f32 0.0, %v449
          %451 = vmatmul.f32.gmra.mxu0 %v334
          %v452 = vpop.f32.mrf.mxu0
          %v453 = vadd.f32 0.0, %v452
          %454 = vmatmul.f32.gmra.mxu0 %v337
          %v455 = vpop.f32.mrf.mxu0
          %v456 = vadd.f32 0.0, %v455
          %457 = vmatmul.f32.gmra.mxu0 %v340
          %v458 = vpop.f32.mrf.mxu0
          %v459 = vadd.f32 0.0, %v458
          %460 = vmatmul.f32.gmra.mxu0 %v343
          %v461 = vpop.f32.mrf.mxu0
          %v462 = vadd.f32 0.0, %v461
          %463 = vmatmul.f32.gmra.mxu0 %v346
          %v464 = vpop.f32.mrf.mxu0
          %v465 = vadd.f32 0.0, %v464
          %466 = vmatmul.f32.gmra.mxu0 %v349
          %v467 = vpop.f32.mrf.mxu0
          %v468 = vadd.f32 0.0, %v467
          %469 = vmatmul.f32.gmra.mxu0 %v352
          %v470 = vpop.f32.mrf.mxu0
          %v471 = vadd.f32 0.0, %v470
          %472 = vmatmul.f32.gmra.mxu0 %v355
          %v473 = vpop.f32.mrf.mxu0
          %v474 = vadd.f32 0.0, %v473
          %475 = vmatmul.f32.gmra.mxu0 %v358
          %v476 = vpop.f32.mrf.mxu0
          %v477 = vadd.f32 0.0, %v476
          %478 = vmatmul.f32.gmra.mxu0 %v361
          %v479 = vpop.f32.mrf.mxu0
          %v480 = vadd.f32 0.0, %v479
          %481 = vdwg.mxu0
          %482 = vmatpush.msra.mxu0 0.0
          %483 = vmatpush.msra.mxu0 0.0
          %484 = vmatpush.msra.mxu0 0.0
          %485 = vmatpush.msra.mxu0 0.0
          %486 = vmatpush.msra.mxu0 0.0
          %487 = vmatpush.msra.mxu0 0.0
          %488 = vmatpush.msra.mxu0 0.0
          %489 = vmatpush.msra.mxu0 0.0
          %490 = vmatpush.msra.mxu0 0.0
          %491 = vmatpush.msra.mxu0 0.0
          %492 = vmatpush.msra.mxu0 0.0
          %493 = vmatpush.msra.mxu0 0.0
          %494 = vmatpush.msra.mxu0 0.0
          %495 = vmatpush.msra.mxu0 0.0
          %496 = vmatpush.msra.mxu0 0.0
          %497 = vmatpush.msra.mxu0 %v367
          %498 = vmatmul.f32.gmra.mxu0 %v268
          %v499 = vpop.f32.mrf.mxu0
          %v500 = vadd.f32 0.0, %v499
          %501 = vmatmul.f32.gmra.mxu0 %v271
          %v502 = vpop.f32.mrf.mxu0
          %v503 = vadd.f32 0.0, %v502
          %504 = vmatmul.f32.gmra.mxu0 %v274
          %v505 = vpop.f32.mrf.mxu0
          %v506 = vadd.f32 0.0, %v505
          %507 = vmatmul.f32.gmra.mxu0 %v277
          %v508 = vpop.f32.mrf.mxu0
          %v509 = vadd.f32 0.0, %v508
          %510 = vmatmul.f32.gmra.mxu0 %v280
          %v511 = vpop.f32.mrf.mxu0
          %v512 = vadd.f32 0.0, %v511
          %513 = vmatmul.f32.gmra.mxu0 %v283
          %v514 = vpop.f32.mrf.mxu0
          %v515 = vadd.f32 0.0, %v514
          %516 = vmatmul.f32.gmra.mxu0 %v286
          %v517 = vpop.f32.mrf.mxu0
          %v518 = vadd.f32 0.0, %v517
          %519 = vmatmul.f32.gmra.mxu0 %v289
          %v520 = vpop.f32.mrf.mxu0
          %v521 = vadd.f32 0.0, %v520
          %522 = vmatmul.f32.gmra.mxu0 %v292
          %v523 = vpop.f32.mrf.mxu0
          %v524 = vadd.f32 0.0, %v523
          %525 = vmatmul.f32.gmra.mxu0 %v295
          %v526 = vpop.f32.mrf.mxu0
          %v527 = vadd.f32 0.0, %v526
          %528 = vmatmul.f32.gmra.mxu0 %v298
          %v529 = vpop.f32.mrf.mxu0
          %v530 = vadd.f32 0.0, %v529
          %531 = vmatmul.f32.gmra.mxu0 %v301
          %v532 = vpop.f32.mrf.mxu0
          %v533 = vadd.f32 0.0, %v532
          %534 = vmatmul.f32.gmra.mxu0 %v304
          %v535 = vpop.f32.mrf.mxu0
          %v536 = vadd.f32 0.0, %v535
          %537 = vmatmul.f32.gmra.mxu0 %v307
          %v538 = vpop.f32.mrf.mxu0
          %v539 = vadd.f32 0.0, %v538
          %540 = vmatmul.f32.gmra.mxu0 %v310
          %v541 = vpop.f32.mrf.mxu0
          %v542 = vadd.f32 0.0, %v541
          %543 = vmatmul.f32.gmra.mxu0 %v313
          %v544 = vpop.f32.mrf.mxu0
          %v545 = vadd.f32 0.0, %v544
          %546 = vmatmul.f32.gmra.mxu0 %v316
          %v547 = vpop.f32.mrf.mxu0
          %v548 = vadd.f32 0.0, %v547
          %549 = vmatmul.f32.gmra.mxu0 %v319
          %v550 = vpop.f32.mrf.mxu0
          %v551 = vadd.f32 0.0, %v550
          %552 = vmatmul.f32.gmra.mxu0 %v322
          %v553 = vpop.f32.mrf.mxu0
          %v554 = vadd.f32 0.0, %v553
          %555 = vmatmul.f32.gmra.mxu0 %v325
          %v556 = vpop.f32.mrf.mxu0
          %v557 = vadd.f32 0.0, %v556
          %558 = vmatmul.f32.gmra.mxu0 %v328
          %v559 = vpop.f32.mrf.mxu0
          %v560 = vadd.f32 0.0, %v559
          %561 = vmatmul.f32.gmra.mxu0 %v331
          %v562 = vpop.f32.mrf.mxu0
          %v563 = vadd.f32 0.0, %v562
          %564 = vmatmul.f32.gmra.mxu0 %v334
          %v565 = vpop.f32.mrf.mxu0
          %v566 = vadd.f32 0.0, %v565
          %567 = vmatmul.f32.gmra.mxu0 %v337
          %v568 = vpop.f32.mrf.mxu0
          %v569 = vadd.f32 0.0, %v568
          %570 = vmatmul.f32.gmra.mxu0 %v340
          %v571 = vpop.f32.mrf.mxu0
          %v572 = vadd.f32 0.0, %v571
          %573 = vmatmul.f32.gmra.mxu0 %v343
          %v574 = vpop.f32.mrf.mxu0
          %v575 = vadd.f32 0.0, %v574
          %576 = vmatmul.f32.gmra.mxu0 %v346
          %v577 = vpop.f32.mrf.mxu0
          %v578 = vadd.f32 0.0, %v577
          %579 = vmatmul.f32.gmra.mxu0 %v349
          %v580 = vpop.f32.mrf.mxu0
          %v581 = vadd.f32 0.0, %v580
          %582 = vmatmul.f32.gmra.mxu0 %v352
          %v583 = vpop.f32.mrf.mxu0
          %v584 = vadd.f32 0.0, %v583
          %585 = vmatmul.f32.gmra.mxu0 %v355
          %v586 = vpop.f32.mrf.mxu0
          %v587 = vadd.f32 0.0, %v586
          %588 = vmatmul.f32.gmra.mxu0 %v358
          %v589 = vpop.f32.mrf.mxu0
          %v590 = vadd.f32 0.0, %v589
          %591 = vmatmul.f32.gmra.mxu0 %v361
          %v592 = vpop.f32.mrf.mxu0
          %v593 = vadd.f32 0.0, %v592
          %594 = vdwg.mxu0
          %s595 = smul.u32 %s173, 64
          %s596 = smul.addr %s595, 8
          %s597 = scalar_lea.vmem %s164, %s596 [#allocation2]
          %598 = vst [vmem:[%s597] sm:$0xff] %v387
          %599 = vst [vmem:[%s597 + $0x8] sm:$0xff] %v500
          %600 = vst [vmem:[%s597 + $0x10] sm:$0xff] %v390
          %601 = vst [vmem:[%s597 + $0x18] sm:$0xff] %v503
          %602 = vst [vmem:[%s597 + $0x20] sm:$0xff] %v393
          %603 = vst [vmem:[%s597 + $0x28] sm:$0xff] %v506
          %604 = vst [vmem:[%s597 + $0x30] sm:$0xff] %v396
          %605 = vst [vmem:[%s597 + $0x38] sm:$0xff] %v509
          %606 = vst [vmem:[%s597 + $0x40] sm:$0xff] %v399
          %607 = vst [vmem:[%s597 + $0x48] sm:$0xff] %v512
          %608 = vst [vmem:[%s597 + $0x50] sm:$0xff] %v402
          %609 = vst [vmem:[%s597 + $0x58] sm:$0xff] %v515
          %610 = vst [vmem:[%s597 + $0x60] sm:$0xff] %v405
          %611 = vst [vmem:[%s597 + $0x68] sm:$0xff] %v518
          %612 = vst [vmem:[%s597 + $0x70] sm:$0xff] %v408
          %613 = vst [vmem:[%s597 + $0x78] sm:$0xff] %v521
          %614 = vst [vmem:[%s597 + $0x80] sm:$0xff] %v411
          %615 = vst [vmem:[%s597 + $0x88] sm:$0xff] %v524
          %616 = vst [vmem:[%s597 + $0x90] sm:$0xff] %v414
          %617 = vst [vmem:[%s597 + $0x98] sm:$0xff] %v527
          %618 = vst [vmem:[%s597 + $0xa0] sm:$0xff] %v417
          %619 = vst [vmem:[%s597 + $0xa8] sm:$0xff] %v530
          %620 = vst [vmem:[%s597 + $0xb0] sm:$0xff] %v420
          %621 = vst [vmem:[%s597 + $0xb8] sm:$0xff] %v533
          %622 = vst [vmem:[%s597 + $0xc0] sm:$0xff] %v423
          %623 = vst [vmem:[%s597 + $0xc8] sm:$0xff] %v536
          %624 = vst [vmem:[%s597 + $0xd0] sm:$0xff] %v426
          %625 = vst [vmem:[%s597 + $0xd8] sm:$0xff] %v539
          %626 = vst [vmem:[%s597 + $0xe0] sm:$0xff] %v429
          %627 = vst [vmem:[%s597 + $0xe8] sm:$0xff] %v542
          %628 = vst [vmem:[%s597 + $0xf0] sm:$0xff] %v432
          %629 = vst [vmem:[%s597 + $0xf8] sm:$0xff] %v545
          %630 = vst [vmem:[%s597 + $0x100] sm:$0xff] %v435
          %631 = vst [vmem:[%s597 + $0x108] sm:$0xff] %v548
          %632 = vst [vmem:[%s597 + $0x110] sm:$0xff] %v438
          %633 = vst [vmem:[%s597 + $0x118] sm:$0xff] %v551
          %634 = vst [vmem:[%s597 + $0x120] sm:$0xff] %v441
          %635 = vst [vmem:[%s597 + $0x128] sm:$0xff] %v554
          %636 = vst [vmem:[%s597 + $0x130] sm:$0xff] %v444
          %637 = vst [vmem:[%s597 + $0x138] sm:$0xff] %v557
          %638 = vst [vmem:[%s597 + $0x140] sm:$0xff] %v447
          %639 = vst [vmem:[%s597 + $0x148] sm:$0xff] %v560
          %640 = vst [vmem:[%s597 + $0x150] sm:$0xff] %v450
          %641 = vst [vmem:[%s597 + $0x158] sm:$0xff] %v563
          %642 = vst [vmem:[%s597 + $0x160] sm:$0xff] %v453
          %643 = vst [vmem:[%s597 + $0x168] sm:$0xff] %v566
          %644 = vst [vmem:[%s597 + $0x170] sm:$0xff] %v456
          %645 = vst [vmem:[%s597 + $0x178] sm:$0xff] %v569
          %646 = vst [vmem:[%s597 + $0x180] sm:$0xff] %v459
          %647 = vst [vmem:[%s597 + $0x188] sm:$0xff] %v572
          %648 = vst [vmem:[%s597 + $0x190] sm:$0xff] %v462
          %649 = vst [vmem:[%s597 + $0x198] sm:$0xff] %v575
          %650 = vst [vmem:[%s597 + $0x1a0] sm:$0xff] %v465
          %651 = vst [vmem:[%s597 + $0x1a8] sm:$0xff] %v578
          %652 = vst [vmem:[%s597 + $0x1b0] sm:$0xff] %v468
          %653 = vst [vmem:[%s597 + $0x1b8] sm:$0xff] %v581
          %654 = vst [vmem:[%s597 + $0x1c0] sm:$0xff] %v471
          %655 = vst [vmem:[%s597 + $0x1c8] sm:$0xff] %v584
          %656 = vst [vmem:[%s597 + $0x1d0] sm:$0xff] %v474
          %657 = vst [vmem:[%s597 + $0x1d8] sm:$0xff] %v587
          %658 = vst [vmem:[%s597 + $0x1e0] sm:$0xff] %v477
          %659 = vst [vmem:[%s597 + $0x1e8] sm:$0xff] %v590
          %660 = vst [vmem:[%s597 + $0x1f0] sm:$0xff] %v480
          %661 = vst [vmem:[%s597 + $0x1f8] sm:$0xff] %v593
        $region37: #{dense_classifier_forward.3} parent=31 // loop_footer
          %s177 = sadd.s32 1, %s173
        $region38: #{dense_classifier_forward.3} parent=31 // loop_footer_branch
          %172 = sbr.rel target = $region34
        $region39: #{dense_classifier_forward.3} parent=31 // loop_exit
          _
        %s662 = sand.u32 %s93, 1
        %s663 = scalar_lea.sflag [#allocation3], %s662
        %s664 = sand.u32 %s93, 1
        %s665 = smul.addr %s664, 1024
        %s666 = scalar_lea.vmem [#allocation2], %s665
        // Predicated region
        $region40: #{dense_classifier_forward.3} parent=31 // pred_check
          %p667 = pneg %p103
        $region41: #{dense_classifier_forward.3} parent=31 // pred_check_branch
          %669 = sbr.rel (%p667) target = $region43
        $region42: #{dense_classifier_forward.3} parent=31 // pred_region
          %s670 = smul.u32 2, %s17
          %672 = vsyncadd %s663, 0
          %s673 = smul.addr %s670, 64
          %s674 = smul.addr %s673, 8
          %s675 = scalar_lea.hbm %s3, %s674
          %s676 = sshll.u32 %s666, 4
          %s677 = int_to_ptr.vmem [resolvable:$true] %s676
          %s678 = sshll.u32 %s675, 4
          %s679 = int_to_ptr.hbm [resolvable:$true] %s678
          %684 = dma.vmem_to_hbm [thread:$0]  %s677, 16384, %s679, %s663, 256, 256, 16
        $region43: #{dense_classifier_forward.3} parent=31 // pred_fallthru
          _
      $region32: #{dense_classifier_forward.3} parent=5 // pred_fallthru
        _
      %p685 = scmp.le.s32.totalorder 2, %s12
      // Predicated region
      $region44: #{dense_classifier_forward.3} parent=5 // pred_check
        %p686 = pneg %p685
      $region45: #{dense_classifier_forward.3} parent=5 // pred_check_branch
        %688 = sbr.rel (%p686) target = $region47
      $region46: #{dense_classifier_forward.3} parent=5 // pred_region
        %s689 = ssub.s32 %s12, 2
        // Predicated region
        $region48: #{dense_classifier_forward.3} parent=46 // pred_check
          %p690 = pneg %p109
        $region49: #{dense_classifier_forward.3} parent=46 // pred_check_branch
          %692 = sbr.rel (%p690) target = $region51
        $region50: #{dense_classifier_forward.3} parent=46 // pred_region
          %s693 = sand.u32 %s94, 1
          %s694 = scalar_lea.sflag [#allocation3], %s693
          %s695 = sand.u32 %s94, 1
          %s696 = smul.addr %s695, 1024
          %s697 = scalar_lea.vmem [#allocation2], %s696
          %699 = dma.done %s694, 16384
        $region51: #{dense_classifier_forward.3} parent=46 // pred_fallthru
          _
      $region47: #{dense_classifier_forward.3} parent=5 // pred_fallthru
        _
    $region6: #{dense_classifier_forward.3} parent=1 // loop_footer
      %s16 = sadd.s32 1, %s12
    $region7: #{dense_classifier_forward.3} parent=1 // loop_footer_branch
      %11 = sbr.rel target = $region3
    $region8: #{dense_classifier_forward.3} parent=1 // loop_exit
      _
    %700 = vsyncpa [#allocation3], 1
    %s701 = scalar_lea.sflag [#allocation3], 1
    %702 = vsyncpa %s701, 1

</llo_original>
